<compile_context>
chip_gen: v7x
topology: tpu7x:2x2x1
jax: 0.10.0
libtpu: 0.0.40
codegen_flags: <defaults>
</compile_context>

<pallas_src>
import jax
import jax.numpy as jnp
from jax.experimental import pallas as pl
from jax.experimental.pallas import tpu as pltpu


def _round_up(x, m):
    return ((x + m - 1) // m) * m


def _make_kernel(block_bs, block_seq, bs, seq):
    needs_row_mask = (bs % block_bs) != 0
    needs_col_mask = (seq % block_seq) != 0
    n_lane_groups = block_seq // 128
    n_sub_groups = block_bs // 8

    def kernel(preds_ref, targets_ref, mask_ref,
               sum_out_ref, cnt_out_ref, sum_sc, cnt_sc):
        k = pl.program_id(1)  # seq (reduction) axis — last grid axis

        @pl.when(k == 0)
        def _init():
            sum_sc[...] = jnp.zeros_like(sum_sc)
            cnt_sc[...] = jnp.zeros_like(cnt_sc)

        # Upcast per-tile (inputs may be bf16 / int8); accumulate in f32 / i32.
        p = preds_ref[...].astype(jnp.float32)
        t = targets_ref[...].astype(jnp.float32)
        m_raw = mask_ref[...]
        m = m_raw.astype(jnp.float32)

        masked_abs = jnp.abs(p - t) * m
        nz = m_raw != 0

        # Validity mask for partial edge blocks (OOB region is NOT zero-filled;
        # it can contain arbitrary stale data, so mask the product, not just m).
        valid = None
        if needs_row_mask:
            row = (jax.lax.broadcasted_iota(jnp.int32, (block_bs, block_seq), 0)
                   + pl.program_id(0) * block_bs)
            valid = row < bs
        if needs_col_mask:
            col = (jax.lax.broadcasted_iota(jnp.int32, (block_bs, block_seq), 1)
                   + k * block_seq)
            cvalid = col < seq
            valid = cvalid if valid is None else jnp.logical_and(valid, cvalid)
        if valid is not None:
            masked_abs = jnp.where(valid, masked_abs, 0.0)
            nz = jnp.logical_and(nz, valid)
        nzi = nz.astype(jnp.int32)

        # Fold lane groups with pure elementwise vreg adds (no per-step XLU).
        s_part = masked_abs[:, 0:128]
        c_part = nzi[:, 0:128]
        for g in range(1, n_lane_groups):
            sl = slice(g * 128, (g + 1) * 128)
            s_part = s_part + masked_abs[:, sl]
            c_part = c_part + nzi[:, sl]

        sum_sc[...] += s_part
        cnt_sc[...] += c_part

        @pl.when(k == pl.num_programs(1) - 1)
        def _finalize():
            # One sublane-group fold per bs-chunk, then a lane-dense (1,8,128)
            # write.  Cross-lane reduction is left to the (tiny) wrapper sum.
            acc_s = sum_sc[...]
            acc_c = cnt_sc[...]
            fs = acc_s[0:8, :]
            fc = acc_c[0:8, :]
            for q in range(1, n_sub_groups):
                sl = slice(q * 8, (q + 1) * 8)
                fs = fs + acc_s[sl, :]
                fc = fc + acc_c[sl, :]
            sum_out_ref[0] = fs
            cnt_out_ref[0] = fc

    return kernel


def seq_masked_l1_loss(preds, targets, seq_mask, loss_weight=1.0, *,
                       max_block_bs=256, max_block_seq=8192,
                       target_tile_bytes=6 << 20):
    """preds, targets, seq_mask: [bs, seq]. Returns scalar f32 loss.

    NOTE: an all-zero seq_mask divides by zero (inf/nan), exactly like the
    PyTorch reference.
    """
    assert preds.shape == targets.shape == seq_mask.shape
    assert preds.ndim == 2
    bs, seq = preds.shape

    # Keep native dtypes — no wrapper-side pad or upcast (each would be an
    # extra full HBM pass).  Only narrow bool masks to int8 (cheapest stream).
    if seq_mask.dtype == jnp.bool_:
        seq_mask = seq_mask.astype(jnp.int8)

    itemsizes = [jnp.dtype(a.dtype).itemsize for a in (preds, targets, seq_mask)]
    bytes_per_elem = sum(itemsizes)
    min_item = min(itemsizes)
    sub_align = {8: 8, 4: 8, 2: 16, 1: 32}.get(min_item, 8)

    # bs blocking: multiple of sub_align; aim for >=2 "parallel" chunks so both
    # v7x TensorCores get work (harmless on single-TC v5e/v6e).
    if bs >= 2 * sub_align:
        block_bs = min(_round_up(min(max_block_bs, bs), sub_align),
                       _round_up(pl.cdiv(bs, 2), sub_align))
    else:
        block_bs = _round_up(bs, sub_align)

    # seq blocking: multiple of 128, sized so one grid step streams roughly
    # target_tile_bytes across the three inputs (amortizes ~0.35us/step).
    seq_cap = min(_round_up(seq, 128), _round_up(max_block_seq, 128))
    bytes_per_col = block_bs * bytes_per_elem
    ideal_seq = max(128, (target_tile_bytes // bytes_per_col) // 128 * 128)
    block_seq = int(min(seq_cap, ideal_seq))

    n_bs = pl.cdiv(bs, block_bs)
    n_seq = pl.cdiv(seq, block_seq)

    in_spec = pl.BlockSpec((block_bs, block_seq), lambda i, k: (i, k))
    out_specs = (
        pl.BlockSpec((1, 8, 128), lambda i, k: (i, 0, 0)),
        pl.BlockSpec((1, 8, 128), lambda i, k: (i, 0, 0)),
    )
    out_shape = (
        jax.ShapeDtypeStruct((n_bs, 8, 128), jnp.float32),  # masked |diff| partials
        jax.ShapeDtypeStruct((n_bs, 8, 128), jnp.int32),    # nonzero-mask partials
    )

    # VMEM budget: 3 double-buffered input tiles + outputs + scratch + slack,
    # capped at 48 MiB to keep headroom on v7x (64 MiB physical per TC).
    in_tile_bytes = block_bs * block_seq * bytes_per_elem
    out_tile_bytes = 2 * (8 * 128 * 4)
    scratch_bytes = block_bs * 128 * (4 + 4)
    vmem_limit = 2 * in_tile_bytes + 2 * out_tile_bytes + scratch_bytes + (2 << 20)
    vmem_limit = int(min(max(vmem_limit, 16 << 20), 48 << 20))

    n_elems = bs * seq
    cost = pl.CostEstimate(
        flops=6 * n_elems,
        transcendentals=0,
        bytes_accessed=int(n_elems * bytes_per_elem + n_bs * 2 * 8 * 128 * 4),
    )

    part_sum, part_cnt = pl.pallas_call(
        _make_kernel(block_bs, block_seq, bs, seq),
        out_shape=out_shape,
        grid=(n_bs, n_seq),
        in_specs=[in_spec, in_spec, in_spec],
        out_specs=out_specs,
        scratch_shapes=[pltpu.VMEM((block_bs, 128), jnp.float32),
                        pltpu.VMEM((block_bs, 128), jnp.int32)],
        compiler_params=pltpu.CompilerParams(
            dimension_semantics=("parallel", "arbitrary"),
            vmem_limit_bytes=vmem_limit),
        cost_estimate=cost,
    )(preds, targets, seq_mask)

    total = jnp.sum(part_sum)
    count = jnp.sum(part_cnt).astype(jnp.float32)
    return (jnp.asarray(loss_weight, jnp.float32) * total / count).astype(jnp.float32)


def _reference(preds, targets, seq_mask, loss_weight=1.0):
    p = preds.astype(jnp.float32)
    t = targets.astype(jnp.float32)
    m = seq_mask.astype(jnp.float32)
    loss = jnp.abs(p - t) * m
    non_mask_num = jnp.sum(m != 0).astype(jnp.float32)
    return loss_weight * jnp.sum(loss) / non_mask_num


if __name__ == "__main__":
    key = jax.random.PRNGKey(0)
    k1, k2, k3 = jax.random.split(key, 3)

    # Test 1: small shape consistent with the module: preds/targets/seq_mask [bs, seq].
    bs, seq = 2, 8
    preds = jax.random.normal(k1, (bs, seq), dtype=jnp.float32)
    targets = jax.random.normal(k2, (bs, seq), dtype=jnp.float32)
    seq_mask = (jax.random.uniform(k3, (bs, seq)) > 0.3).astype(jnp.float32)
    seq_mask = seq_mask.at[0, 0].set(1.0)  # guarantee nonzero count

    out = seq_masked_l1_loss(preds, targets, seq_mask, loss_weight=2.0)
    out = jax.block_until_ready(out)
    ref = _reference(preds, targets, seq_mask, 2.0)
    assert jnp.allclose(out, ref, rtol=1e-5, atol=1e-6), (out, ref)

    # Test 2: ragged seq with native bf16 preds/targets, f32 mask (no wrapper
    # pad / no mask upcast; in-kernel tail masking on both axes).
    k4, k5, k6 = jax.random.split(k3, 3)
    bs2, seq2 = 4, 300
    p2 = jax.random.normal(k4, (bs2, seq2), dtype=jnp.bfloat16)
    t2 = jax.random.normal(k5, (bs2, seq2), dtype=jnp.bfloat16)
    m2 = (jax.random.uniform(k6, (bs2, seq2)) > 0.5).astype(jnp.float32)
    m2 = m2.at[0, 0].set(1.0)
    out2 = seq_masked_l1_loss(p2, t2, m2, loss_weight=0.5)
    out2 = jax.block_until_ready(out2)
    ref2 = _reference(p2, t2, m2, 0.5)
    assert jnp.allclose(out2, ref2, rtol=1e-4, atol=1e-4), (out2, ref2)

    # Test 3: multi-block along both axes (2 parallel bs chunks, 3 seq chunks
    # with a partial tail) to exercise the grid reduction + edge masking.
    k7, k8, k9 = jax.random.split(k6, 3)
    bs3, seq3 = 20, 520
    p3 = jax.random.normal(k7, (bs3, seq3), dtype=jnp.float32)
    t3 = jax.random.normal(k8, (bs3, seq3), dtype=jnp.float32)
    m3 = (jax.random.uniform(k9, (bs3, seq3)) > 0.4).astype(jnp.float32)
    m3 = m3.at[0, 0].set(1.0)
    out3 = seq_masked_l1_loss(p3, t3, m3, loss_weight=1.5, max_block_seq=256)
    out3 = jax.block_until_ready(out3)
    ref3 = _reference(p3, t3, m3, 1.5)
    assert jnp.allclose(out3, ref3, rtol=1e-5, atol=1e-5), (out3, ref3)

    print("KERNEL_OK")
</pallas_src>

<mosaic_0001>
module attributes {stable_mosaic.version = 11 : i64} {
  func.func @kernel(%arg0: i32, %arg1: i32, %arg2: memref<8x128xf32, #tpu.memory_space<vmem>>, %arg3: memref<8x128xf32, #tpu.memory_space<vmem>>, %arg4: memref<8x128xf32, #tpu.memory_space<vmem>>, %arg5: memref<1x8x128xf32, #tpu.memory_space<vmem>>, %arg6: memref<1x8x128xi32, #tpu.memory_space<vmem>>, %arg7: memref<8x128xf32, #tpu.memory_space<vmem>>, %arg8: memref<8x128xi32, #tpu.memory_space<vmem>>) attributes {dimension_semantics = [#tpu.dimension_semantics<parallel>, #tpu.dimension_semantics<arbitrary>], iteration_bounds = array<i64: 1, 1>, scalar_prefetch = 0 : i64, scratch_operands = 2 : i64, tpu.core_type = #tpu.core_type<tc>, window_params = [{transform_indices = @transform_0, window_bounds = array<i64: 8, 128>}, {transform_indices = @transform_1, window_bounds = array<i64: 8, 128>}, {transform_indices = @transform_2, window_bounds = array<i64: 8, 128>}, {transform_indices = @transform_3, window_bounds = array<i64: 1, 8, 128>}, {transform_indices = @transform_4, window_bounds = array<i64: 1, 8, 128>}]} {
    %c0_i32 = arith.constant 0 : i32
    %0 = arith.cmpi eq, %arg1, %c0_i32 : i32
    %1 = arith.extui %0 : i1 to i32
    %c0_i32_0 = arith.constant 0 : i32
    %2 = arith.cmpi ne, %1, %c0_i32_0 : i32
    scf.if %2 {
      %cst_18 = arith.constant 0.000000e+00 : f32
      %37 = vector.broadcast %cst_18 : f32 to vector<8x128xf32>
      %c0_19 = arith.constant 0 : index
      %c0_20 = arith.constant 0 : index
      %38 = vector.load %arg7[%c0_19, %c0_20] : memref<8x128xf32, #tpu.memory_space<vmem>>, vector<8x128xf32>
      tpu.vector_store %arg7[%c0_19, %c0_20], %37 {strides = array<i32>} : memref<8x128xf32, #tpu.memory_space<vmem>>, vector<8x128xf32>,
      %c0_i32_21 = arith.constant 0 : i32
      %39 = vector.broadcast %c0_i32_21 : i32 to vector<8x128xi32>
      %c0_22 = arith.constant 0 : index
      %c0_23 = arith.constant 0 : index
      %40 = vector.load %arg8[%c0_22, %c0_23] : memref<8x128xi32, #tpu.memory_space<vmem>>, vector<8x128xi32>
      tpu.vector_store %arg8[%c0_22, %c0_23], %39 {strides = array<i32>} : memref<8x128xi32, #tpu.memory_space<vmem>>, vector<8x128xi32>,
    } else {
    }
    %c0 = arith.constant 0 : index
    %c0_1 = arith.constant 0 : index
    %3 = vector.load %arg2[%c0, %c0_1] : memref<8x128xf32, #tpu.memory_space<vmem>>, vector<8x128xf32>
    %c0_2 = arith.constant 0 : index
    %c0_3 = arith.constant 0 : index
    %4 = vector.load %arg3[%c0_2, %c0_3] : memref<8x128xf32, #tpu.memory_space<vmem>>, vector<8x128xf32>
    %c0_4 = arith.constant 0 : index
    %c0_5 = arith.constant 0 : index
    %5 = vector.load %arg4[%c0_4, %c0_5] : memref<8x128xf32, #tpu.memory_space<vmem>>, vector<8x128xf32>
    %6 = arith.subf %3, %4 : vector<8x128xf32>
    %7 = math.absf %6 : vector<8x128xf32>
    %8 = arith.mulf %7, %5 : vector<8x128xf32>
    %cst = arith.constant 0.000000e+00 : f32
    %9 = vector.broadcast %cst : f32 to vector<8x128xf32>
    %10 = arith.cmpf one, %5, %9 : vector<8x128xf32>
    %11 = tpu.iota {dimensions = array<i32: 0>} : vector<8x128xi32>
    %c8_i32 = arith.constant 8 : i32
    %12 = arith.muli %arg0, %c8_i32 : i32
    %13 = vector.broadcast %12 : i32 to vector<8x128xi32>
    %14 = arith.addi %11, %13 : vector<8x128xi32>
    %c2_i32 = arith.constant 2 : i32
    %15 = vector.broadcast %c2_i32 : i32 to vector<8x128xi32>
    %16 = arith.cmpi slt, %14, %15 : vector<8x128xi32>
    %17 = tpu.iota {dimensions = array<i32: 1>} : vector<8x128xi32>
    %c128_i32 = arith.constant 128 : i32
    %18 = arith.muli %arg1, %c128_i32 : i32
    %19 = vector.broadcast %18 : i32 to vector<8x128xi32>
    %20 = arith.addi %17, %19 : vector<8x128xi32>
    %c8_i32_6 = arith.constant 8 : i32
    %21 = vector.broadcast %c8_i32_6 : i32 to vector<8x128xi32>
    %22 = arith.cmpi slt, %20, %21 : vector<8x128xi32>
    %23 = arith.andi %16, %22 : vector<8x128xi1>
    %cst_7 = arith.constant 0.000000e+00 : f32
    %24 = vector.broadcast %cst_7 : f32 to vector<8x128xf32>
    %25 = arith.select %23, %8, %24 : vector<8x128xi1>, vector<8x128xf32>
    %26 = arith.andi %10, %23 : vector<8x128xi1>
    %27 = arith.extui %26 : vector<8x128xi1> to vector<8x128xi32>
    %c0_8 = arith.constant 0 : index
    %c0_9 = arith.constant 0 : index
    %28 = vector.load %arg7[%c0_8, %c0_9] : memref<8x128xf32, #tpu.memory_space<vmem>>, vector<8x128xf32>
    %29 = arith.addf %28, %25 : vector<8x128xf32>
    %c0_10 = arith.constant 0 : index
    %c0_11 = arith.constant 0 : index
    %30 = vector.load %arg7[%c0_10, %c0_11] : memref<8x128xf32, #tpu.memory_space<vmem>>, vector<8x128xf32>
    tpu.vector_store %arg7[%c0_10, %c0_11], %29 {strides = array<i32>} : memref<8x128xf32, #tpu.memory_space<vmem>>, vector<8x128xf32>,
    %c0_12 = arith.constant 0 : index
    %c0_13 = arith.constant 0 : index
    %31 = vector.load %arg8[%c0_12, %c0_13] : memref<8x128xi32, #tpu.memory_space<vmem>>, vector<8x128xi32>
    %32 = arith.addi %31, %27 : vector<8x128xi32>
    %c0_14 = arith.constant 0 : index
    %c0_15 = arith.constant 0 : index
    %33 = vector.load %arg8[%c0_14, %c0_15] : memref<8x128xi32, #tpu.memory_space<vmem>>, vector<8x128xi32>
    tpu.vector_store %arg8[%c0_14, %c0_15], %32 {strides = array<i32>} : memref<8x128xi32, #tpu.memory_space<vmem>>, vector<8x128xi32>,
    %c0_i32_16 = arith.constant 0 : i32
    %34 = arith.cmpi eq, %arg1, %c0_i32_16 : i32
    %35 = arith.extui %34 : i1 to i32
    %c0_i32_17 = arith.constant 0 : i32
    %36 = arith.cmpi ne, %35, %c0_i32_17 : i32
    scf.if %36 {
      %c0_18 = arith.constant 0 : index
      %c0_19 = arith.constant 0 : index
      %37 = vector.load %arg7[%c0_18, %c0_19] : memref<8x128xf32, #tpu.memory_space<vmem>>, vector<8x128xf32>
      %c0_20 = arith.constant 0 : index
      %c0_21 = arith.constant 0 : index
      %38 = vector.load %arg8[%c0_20, %c0_21] : memref<8x128xi32, #tpu.memory_space<vmem>>, vector<8x128xi32>
      %c0_22 = arith.constant 0 : index
      %c0_23 = arith.constant 0 : index
      %c0_24 = arith.constant 0 : index
      %39 = vector.load %arg5[%c0_22, %c0_23, %c0_24] : memref<1x8x128xf32, #tpu.memory_space<vmem>>, vector<1x8x128xf32>
      %40 = vector.shape_cast %39 : vector<1x8x128xf32> to vector<8x128xf32>
      %41 = vector.shape_cast %37 : vector<8x128xf32> to vector<1x8x128xf32>
      tpu.vector_store %arg5[%c0_22, %c0_23, %c0_24], %41 {strides = array<i32>} : memref<1x8x128xf32, #tpu.memory_space<vmem>>, vector<1x8x128xf32>,
      %c0_25 = arith.constant 0 : index
      %c0_26 = arith.constant 0 : index
      %c0_27 = arith.constant 0 : index
      %42 = vector.load %arg6[%c0_25, %c0_26, %c0_27] : memref<1x8x128xi32, #tpu.memory_space<vmem>>, vector<1x8x128xi32>
      %43 = vector.shape_cast %42 : vector<1x8x128xi32> to vector<8x128xi32>
      %44 = vector.shape_cast %38 : vector<8x128xi32> to vector<1x8x128xi32>
      tpu.vector_store %arg6[%c0_25, %c0_26, %c0_27], %44 {strides = array<i32>} : memref<1x8x128xi32, #tpu.memory_space<vmem>>, vector<1x8x128xi32>,
    } else {
    }
    return
  }
  func.func @transform_0(%arg0: i32, %arg1: i32) -> (i32, i32) {
    %c0_i32 = arith.constant 0 : i32
    return %arg0, %arg1 : i32, i32
  }
  func.func @transform_1(%arg0: i32, %arg1: i32) -> (i32, i32) {
    %c0_i32 = arith.constant 0 : i32
    return %arg0, %arg1 : i32, i32
  }
  func.func @transform_2(%arg0: i32, %arg1: i32) -> (i32, i32) {
    %c0_i32 = arith.constant 0 : i32
    return %arg0, %arg1 : i32, i32
  }
  func.func @transform_3(%arg0: i32, %arg1: i32) -> (i32, i32, i32) {
    %c0_i32 = arith.constant 0 : i32
    %c0_i32_0 = arith.constant 0 : i32
    %c0_i32_1 = arith.constant 0 : i32
    return %arg0, %c0_i32, %c0_i32_0 : i32, i32, i32
  }
  func.func @transform_4(%arg0: i32, %arg1: i32) -> (i32, i32, i32) {
    %c0_i32 = arith.constant 0 : i32
    %c0_i32_0 = arith.constant 0 : i32
    %c0_i32_1 = arith.constant 0 : i32
    return %arg0, %c0_i32, %c0_i32_0 : i32, i32, i32
  }
}

</mosaic_0001>

<llo_original>
// kernel: tpu_custom_call.1
$region0: #{tpu_custom_call.1}
  #allocation0 [shape = 'u32[]', space=smem, size = 0x4, offset = 0x4, fixed_abs, tag = 'smem constant byte address 0x4 - core index']
  #allocation1 [shape = 'u32[144,128]{1,0:T(1,128)}', space=vmem, size = 0x12000, scoped, tag = 'internal scratch']
  #allocation2 [shape = 'f32[8,128]{1,0:T(8,128)}', space=vmem, size = 0x1000, scoped, tag = 'scratch operand']
  #allocation3 [shape = 's32[8,128]{1,0:T(8,128)}', space=vmem, size = 0x1000, scoped, tag = 'scratch operand']
  %s0 = inlined_call_operand.hbm [shape: f32[2,8], index: 0, kind: input, shape index: {}]
  %s1 = inlined_call_operand.vmem [shape: f32[2,8], index: 1, kind: input, shape index: {}]
  %s2 = inlined_call_operand.vmem [shape: f32[2,8], index: 2, kind: input, shape index: {}]
  %s3 = inlined_call_operand.hbm [shape: f32[1,8,128], index: 3, kind: output, shape index: {0}]
  %s4 = inlined_call_operand.hbm [shape: s32[1,8,128], index: 4, kind: output, shape index: {1}]
  %5 = xla_tuple %s3, %s4
  %s6 = sld [smem:[#allocation0]]
  $region42: #{tpu_custom_call.1} parent=0
    _
  %s8 = ssub.s32 1, %s6
  %s9 = scalar_select 0, %s8, %s6
  $region1: #{tpu_custom_call.1} parent=0
    #allocation4 [shape = 'u8[4096]{0}', space=vmem, size = 0x1000, scoped, tag = 'input window, operand 0, single buffered']
    #allocation5 [shape = 's32[1]{0}', space=sflag, size = 0x4, scoped, tag = 'scoped memory for tpu_custom_call.1']
    #allocation6 [shape = 's32[1]{0}', space=sflag, size = 0x4, scoped, tag = 'scoped memory for tpu_custom_call.1']
    #allocation7 [shape = 'u8[4096]{0}', space=vmem, size = 0x1000, scoped, tag = 'output window, operand 0, single buffered']
    #allocation8 [shape = 'u8[4096]{0}', space=vmem, size = 0x1000, scoped, tag = 'output window, operand 1, single buffered']
    #allocation9 [shape = 's32[1]{0}', space=sflag, size = 0x4, scoped, tag = 'scoped memory for tpu_custom_call.1']
    %10 = vsyncpa [#allocation5], 0
    %11 = vsyncpa [#allocation6], 0
    %12 = vsyncpa [#allocation9], 0
    // Predicated region
    $region2: #{tpu_custom_call.1} parent=1 // pred_check
      _
    $region3: #{tpu_custom_call.1} parent=1 // pred_check_branch
      %14 = sbr.rel (0) target = $region5
    $region4: #{tpu_custom_call.1} parent=1 // pred_region
      %s16 = ssub.s32 128, 32
      %17 = vsyncadd [#allocation5], %s16
      %s18 = sshll.u32 [#allocation4], 4
      %s19 = int_to_ptr.vmem [resolvable:$true] %s18
      %24 = dma.hbm_to_vmem [thread:$0]  %s0, 32, %s19, [#allocation5], 32, 32, 2
    $region5: #{tpu_custom_call.1} parent=1 // pred_fallthru
      _
    // Predicated region
    $region6: #{tpu_custom_call.1} parent=1 // pred_check
      _
    $region7: #{tpu_custom_call.1} parent=1 // pred_check_branch
      %26 = sbr.rel (0) target = $region9
    $region8: #{tpu_custom_call.1} parent=1 // pred_region
      _
    $region9: #{tpu_custom_call.1} parent=1 // pred_fallthru
      _
    // Predicated region
    $region10: #{tpu_custom_call.1} parent=1 // pred_check
      _
    $region11: #{tpu_custom_call.1} parent=1 // pred_check_branch
      %28 = sbr.rel (0) target = $region13
    $region12: #{tpu_custom_call.1} parent=1 // pred_region
      _
    $region13: #{tpu_custom_call.1} parent=1 // pred_fallthru
      _
    // Predicated region
    $region14: #{tpu_custom_call.1} parent=1 // pred_check
      _
    $region15: #{tpu_custom_call.1} parent=1 // pred_check_branch
      %30 = sbr.rel (0) target = $region17
    $region16: #{tpu_custom_call.1} parent=1 // pred_region
      %31 = dma.done [#allocation5], 128
    $region17: #{tpu_custom_call.1} parent=1 // pred_fallthru
      _
    %p32 = scmp.eq.s32.totalorder 0, 0
    // Predicated region
    $region18: #{tpu_custom_call.1} parent=1 // pred_check
      %p33 = pneg %p32
    $region19: #{tpu_custom_call.1} parent=1 // pred_check_branch
      %35 = sbr.rel (%p33) target = $region21
    $region20: #{tpu_custom_call.1} parent=1 // pred_region
      %36 = vst [vmem:[#allocation2] sm:$0xff] 0.0
      %37 = vst [vmem:[#allocation3] sm:$0xff] 0
    $region21: #{tpu_custom_call.1} parent=1 // pred_fallthru
      _
    %v38 = vld [vmem:[#allocation4] sm:$0xff]
    %v39 = vld [vmem:[%s1] sm:$0xff]
    %v40 = vld [vmem:[%s2] sm:$0xff]
    %v41 = vsub.f32 %v38, %v39
    %v42 = vand.u32 2147483647, %v41
    %v43 = vmul.f32 %v42, %v40
    %vm44 = vcmp.ne.f32.partialorder %v40, 0.0
    %v45 = vlaneseq
    %v46 = vshrl.u32 %v45, 7
    %s47 = smul.u32 0, 8
    %v48 = vstv %s47
    %v49 = vadd.s32 %v46, %v48
    %vm50 = vcmp.lt.s32.totalorder %v49, 2
    %v51 = vlaneseq
    %v52 = vand.u32 %v51, 127
    %s53 = smul.u32 0, 128
    %v54 = vstv %s53
    %v55 = vadd.s32 %v52, %v54
    %vm56 = vcmp.lt.s32.totalorder %v55, 8
    %vm57 = vmand %vm50, %vm56
    %v58 = vsel %vm57, %v43, 0.0
    %vm59 = vmand %vm44, %vm57
    %v60 = vsel %vm59, 1, 0
    %v61 = vld [vmem:[#allocation2] sm:$0xff]
    %v62 = vadd.f32 %v61, %v58
    %63 = vst [vmem:[#allocation2] sm:$0xff] %v62
    %v64 = vld [vmem:[#allocation3] sm:$0xff]
    %v65 = vadd.s32 %v64, %v60
    %66 = vst [vmem:[#allocation3] sm:$0xff] %v65
    // Predicated region
    $region22: #{tpu_custom_call.1} parent=1 // pred_check
      %p67 = pneg %p32
    $region23: #{tpu_custom_call.1} parent=1 // pred_check_branch
      %69 = sbr.rel (%p67) target = $region25
    $region24: #{tpu_custom_call.1} parent=1 // pred_region
      %v70 = vld [vmem:[#allocation2] sm:$0xff]
      %v71 = vld [vmem:[#allocation3] sm:$0xff]
      %72 = vst [vmem:[#allocation7] sm:$0xff] %v70
      %73 = vst [vmem:[#allocation8] sm:$0xff] %v71
    $region25: #{tpu_custom_call.1} parent=1 // pred_fallthru
      _
    // Predicated region
    $region26: #{tpu_custom_call.1} parent=1 // pred_check
      _
    $region27: #{tpu_custom_call.1} parent=1 // pred_check_branch
      %75 = sbr.rel (0) target = $region29
    $region28: #{tpu_custom_call.1} parent=1 // pred_region
      %s77 = ssub.s32 128, 128
      %78 = vsyncadd [#allocation6], %s77
      %s80 = sshll.u32 [#allocation7], 4
      %s81 = int_to_ptr.vmem [resolvable:$true] %s80
      %83 = dma.vmem_to_hbm [thread:$0]  %s81, 128, %s3, [#allocation6]
    $region29: #{tpu_custom_call.1} parent=1 // pred_fallthru
      _
    // Predicated region
    $region30: #{tpu_custom_call.1} parent=1 // pred_check
      _
    $region31: #{tpu_custom_call.1} parent=1 // pred_check_branch
      %85 = sbr.rel (0) target = $region33
    $region32: #{tpu_custom_call.1} parent=1 // pred_region
      %s87 = ssub.s32 128, 128
      %88 = vsyncadd [#allocation9], %s87
      %s90 = sshll.u32 [#allocation8], 4
      %s91 = int_to_ptr.vmem [resolvable:$true] %s90
      %93 = dma.vmem_to_hbm [thread:$0]  %s91, 128, %s4, [#allocation9]
    $region33: #{tpu_custom_call.1} parent=1 // pred_fallthru
      _
    // Predicated region
    $region34: #{tpu_custom_call.1} parent=1 // pred_check
      _
    $region35: #{tpu_custom_call.1} parent=1 // pred_check_branch
      %95 = sbr.rel (0) target = $region37
    $region36: #{tpu_custom_call.1} parent=1 // pred_region
      %96 = dma.done [#allocation6], 128
    $region37: #{tpu_custom_call.1} parent=1 // pred_fallthru
      _
    // Predicated region
    $region38: #{tpu_custom_call.1} parent=1 // pred_check
      _
    $region39: #{tpu_custom_call.1} parent=1 // pred_check_branch
      %98 = sbr.rel (0) target = $region41
    $region40: #{tpu_custom_call.1} parent=1 // pred_region
      %99 = dma.done [#allocation9], 128
    $region41: #{tpu_custom_call.1} parent=1 // pred_fallthru
      _
    %100 = vsyncpa [#allocation5], 1
    %101 = vsyncpa [#allocation6], 1
    %102 = vsyncpa [#allocation9], 1

</llo_original>
